<compile_context>
chip_gen: v6e
topology: v6e:2x2x1
jax: 0.10.0
libtpu: 0.0.40
codegen_flags: <defaults>
</compile_context>

<pallas_src>
import functools

import jax
import jax.numpy as jnp
from jax.experimental import pallas as pl
from jax.experimental.pallas import tpu as pltpu


def _set_norm_kernel(len_ref, x_ref, w_ref, b_ref, o_ref, *,
                     feature_dim, eps, has_mask, dense_denom):
    # x_ref is either (bt, N, F) or the lane-dense flattened (bt, nf) layout.
    x = x_ref[...].astype(jnp.float32)
    flat = x.ndim == 2
    red_axes = (1,) if flat else (1, 2)

    if has_mask:
        n_valid = len_ref[...]                                     # (bt,1[,1]) int32
        if flat:
            # element j of a flattened row is valid iff j < lengths[b] * F
            col = jax.lax.broadcasted_iota(jnp.int32, (1, x.shape[1]), 1)
            mask = col < n_valid * feature_dim                     # (bt, nf)
        else:
            row = jax.lax.broadcasted_iota(jnp.int32, (1, x.shape[1], 1), 1)
            mask = row < n_valid                                   # (bt, N, 1)
        xm = jnp.where(mask, x, 0.0)
        # lengths == 0 gives denom == 0 -> NaN rows, matching the reference.
        denom = n_valid.astype(jnp.float32) * float(feature_dim)
    else:
        xm = x
        denom = float(dense_denom)

    # Two-pass statistics (numerically stable).
    mean = jnp.sum(xm, axis=red_axes, keepdims=True) / denom
    xc = xm - mean
    if has_mask:
        xc = jnp.where(mask, xc, 0.0)
    var = jnp.sum(xc * xc, axis=red_axes, keepdims=True) / denom
    inv = 1.0 / (jnp.sqrt(var) + eps)                              # (bt,1[,1])

    w = w_ref[...].astype(jnp.float32)
    b = b_ref[...].astype(jnp.float32)
    y = xc * (inv * w) + b
    if has_mask:
        y = jnp.where(mask, y, 0.0)
    o_ref[...] = y.astype(o_ref.dtype)


def _vmem_budget_bytes():
    """Generation-aware scoped-VMEM request."""
    cap = 64 << 20  # conservative default: v7x per-TC physical VMEM
    try:
        cap = int(getattr(pltpu.get_tpu_info(), "vmem_capacity_bytes", cap))
    except Exception:
        pass
    # Request at most half the physical capacity (never more than 48 MiB),
    # leaving room for compiler-internal scratch; also lifts v5e's 16 MiB default.
    return max(16 << 20, min(cap // 2, 48 << 20))


def _pick_bt(B, per_batch_stream, per_batch_total, vmem_budget, resident_bytes,
             *, target_block_bytes, need_mult8):
    """How many sets (batch rows) to process per grid step."""
    # (a) VMEM residency cap, keeping ~25% headroom for compiler scratch.
    avail = int(vmem_budget * 0.75) - resident_bytes
    bt_vmem = max(1, avail // max(per_batch_total, 1))
    # (b) ~2-4 MiB of streamed HBM bytes per step amortizes the ~0.35us/step cost.
    bt_tgt = max(1, target_block_bytes // max(per_batch_stream, 1))
    bt = min(B, bt_vmem, bt_tgt)
    # (c) keep the software pipeline busy: once total traffic exceeds ~2 blocks,
    # use at least ~4 grid steps (also a multiple of the v7x TC count).
    if B * per_batch_stream > 2 * target_block_bytes:
        bt = min(bt, max(1, -(-B // 4)))
    if bt >= B:
        return B
    if need_mult8 and bt % 8 != 0:
        # flattened layout: sublane block must be a multiple of 8 (or the full dim)
        if bt > 8:
            bt = (bt // 8) * 8
        elif B > 8:
            bt = 8
        else:
            return B
    return max(1, bt)


def set_norm(x, weights, biases, lengths=None, *, eps: float = 1e-5,
             target_block_bytes: int = 3 << 20):
    """x: (B, N, F) float32/bf16; weights/biases: (F,); lengths: optional (B,) int."""
    B, N, F = x.shape
    has_lengths = lengths is not None

    use_3d = (F % 128 == 0)
    nf = N * F
    lane_pad = 0 if use_3d else (-nf) % 128
    nf_pad = nf + lane_pad

    # Masking is needed for ragged sets, or whenever lane padding was added
    # (padded columns must be excluded from the statistics and the output).
    has_mask = has_lengths or lane_pad > 0
    lens = (lengths.astype(jnp.int32) if has_lengths
            else jnp.full((B,), N, dtype=jnp.int32))

    if use_3d:
        xin = x
        lens_a = lens.reshape(B, 1, 1)
        w_a = weights.reshape(1, 1, F)
        b_a = biases.reshape(1, 1, F)
        nf_eff = nf
        resident = 2 * 2 * F * 4                      # tiny resident affine params
    else:
        xin = x.reshape(B, nf)                        # lane-dense flattened layout
        if lane_pad:
            xin = jnp.pad(xin, ((0, 0), (0, lane_pad)))
        lens_a = lens.reshape(B, 1)
        w_flat = jnp.tile(weights.astype(jnp.float32), N)   # element j -> weights[j % F]
        b_flat = jnp.tile(biases.astype(jnp.float32), N)
        if lane_pad:
            w_flat = jnp.pad(w_flat, (0, lane_pad))
            b_flat = jnp.pad(b_flat, (0, lane_pad))
        w_a = w_flat.reshape(1, nf_pad)
        b_a = b_flat.reshape(1, nf_pad)
        nf_eff = nf_pad
        resident = 2 * 2 * nf_pad * 4                 # VMEM-resident tiled w/b (f32)

    itm = x.dtype.itemsize
    per_batch_stream = nf_eff * 2 * itm               # HBM in+out bytes per row
    per_batch_total = nf_eff * (4 * itm + 12)         # dbl-buffered I/O + f32 temps
    vmem_budget = _vmem_budget_bytes()
    bt = _pick_bt(B, per_batch_stream, per_batch_total, vmem_budget, resident,
                  target_block_bytes=target_block_bytes, need_mult8=not use_3d)
    grid = (pl.cdiv(B, bt),)

    kernel = functools.partial(_set_norm_kernel, feature_dim=F, eps=eps,
                               has_mask=has_mask, dense_denom=N * F)

    if use_3d:
        in_specs = [
            pl.BlockSpec((bt, 1, 1), lambda i: (i, 0, 0)),   # lengths
            pl.BlockSpec((bt, N, F), lambda i: (i, 0, 0)),   # x (native dtype)
            pl.BlockSpec((1, 1, F), lambda i: (0, 0, 0)),    # weights (VMEM-resident)
            pl.BlockSpec((1, 1, F), lambda i: (0, 0, 0)),    # biases  (VMEM-resident)
        ]
        out_spec = pl.BlockSpec((bt, N, F), lambda i: (i, 0, 0))
        out_shape = jax.ShapeDtypeStruct((B, N, F), x.dtype)
    else:
        in_specs = [
            pl.BlockSpec((bt, 1), lambda i: (i, 0)),         # lengths
            pl.BlockSpec((bt, nf_pad), lambda i: (i, 0)),    # x flattened (native dtype)
            pl.BlockSpec((1, nf_pad), lambda i: (0, 0)),     # tiled weights
            pl.BlockSpec((1, nf_pad), lambda i: (0, 0)),     # tiled biases
        ]
        out_spec = pl.BlockSpec((bt, nf_pad), lambda i: (i, 0))
        out_shape = jax.ShapeDtypeStruct((B, nf_pad), x.dtype)

    out = pl.pallas_call(
        kernel,
        out_shape=out_shape,
        grid=grid,
        in_specs=in_specs,
        out_specs=out_spec,
        compiler_params=pltpu.CompilerParams(
            dimension_semantics=("parallel",),
            vmem_limit_bytes=int(vmem_budget),
        ),
    )(lens_a, xin, w_a, b_a)

    if use_3d:
        return out
    if lane_pad:
        out = out[:, :nf]
    return out.reshape(B, N, F)


def _reference(x, weights, biases, lengths=None, eps=1e-5):
    B, N, F = x.shape
    x = x.astype(jnp.float32)
    if lengths is None:
        lengths = jnp.full((B,), N, dtype=jnp.int32)
    mask = jnp.arange(N)[None, :, None] < lengths[:, None, None]
    xm = jnp.where(mask, x, 0.0)
    denom = (lengths * F).astype(jnp.float32)
    means = xm.sum(axis=(1, 2)) / denom
    xc = jnp.where(mask, xm - means[:, None, None], 0.0)
    vars_ = (xc ** 2).sum(axis=(1, 2)) / denom
    xn = xc / (jnp.sqrt(vars_)[:, None, None] + eps)
    y = xn * weights[None, None, :].astype(jnp.float32) + biases[None, None, :].astype(jnp.float32)
    return jnp.where(mask, y, 0.0)


if __name__ == "__main__":
    key = jax.random.PRNGKey(0)
    kx, kw, kb, kx2, kx3, kl = jax.random.split(key, 6)

    # --- Case 1/2/3/4: flattened lane-dense path (F < 128, nf % 128 == 0) ---
    B, N, F = 2, 8, 32
    x = jax.random.normal(kx, (B, N, F), dtype=jnp.float32)
    weights = jnp.ones((F,), dtype=jnp.float32)   # module default init
    biases = jnp.zeros((F,), dtype=jnp.float32)

    out1 = set_norm(x, weights, biases, lengths=None)          # dense (no-mask) path
    jax.block_until_ready(out1)
    ref1 = _reference(x, weights, biases, lengths=None)
    assert jnp.allclose(out1, ref1, atol=1e-4, rtol=1e-4), "mismatch (no lengths)"

    lengths = jnp.array([5, 8], dtype=jnp.int32)
    out2 = set_norm(x, weights, biases, lengths=lengths)       # ragged / masked path
    jax.block_until_ready(out2)
    ref2 = _reference(x, weights, biases, lengths=lengths)
    assert jnp.allclose(out2, ref2, atol=1e-4, rtol=1e-4), "mismatch (with lengths)"

    w3 = 1.0 + 0.1 * jax.random.normal(kw, (F,), dtype=jnp.float32)
    b3 = 0.1 * jax.random.normal(kb, (F,), dtype=jnp.float32)
    out3 = set_norm(x, w3, b3, lengths=lengths)                # non-trivial affine
    jax.block_until_ready(out3)
    ref3 = _reference(x, w3, b3, lengths=lengths)
    assert jnp.allclose(out3, ref3, atol=1e-4, rtol=1e-4), "mismatch (affine params)"

    x_bf16 = x.astype(jnp.bfloat16)                            # native bf16 I/O
    out4 = set_norm(x_bf16, w3, b3, lengths=lengths)
    jax.block_until_ready(out4)
    assert out4.dtype == jnp.bfloat16, "output dtype not preserved for bf16 input"
    ref4 = _reference(x_bf16.astype(jnp.float32), w3, b3, lengths=lengths)
    assert jnp.allclose(out4.astype(jnp.float32), ref4, atol=5e-2, rtol=5e-2), \
        "mismatch (bf16 I/O)"

    # --- Case 5: 3-D path (F % 128 == 0, no host-tiled affine arrays) ---
    B5, N5, F5 = 2, 8, 128
    x5 = jax.random.normal(kx2, (B5, N5, F5), dtype=jnp.float32)
    w5 = 1.0 + 0.1 * jax.random.normal(kw, (F5,), dtype=jnp.float32)
    b5 = 0.1 * jax.random.normal(kb, (F5,), dtype=jnp.float32)
    len5 = jnp.array([5, 8], dtype=jnp.int32)
    out5 = set_norm(x5, w5, b5, lengths=len5)
    jax.block_until_ready(out5)
    ref5 = _reference(x5, w5, b5, lengths=len5)
    assert jnp.allclose(out5, ref5, atol=1e-4, rtol=1e-4), "mismatch (3D path)"

    # --- Case 6: lane-padding path (N*F % 128 != 0) ---
    B6, N6, F6 = 2, 5, 24
    x6 = jax.random.normal(kx3, (B6, N6, F6), dtype=jnp.float32)
    w6 = jnp.ones((F6,), dtype=jnp.float32)
    b6 = jnp.zeros((F6,), dtype=jnp.float32)
    out6 = set_norm(x6, w6, b6, lengths=None)
    jax.block_until_ready(out6)
    ref6 = _reference(x6, w6, b6, lengths=None)
    assert jnp.allclose(out6, ref6, atol=1e-4, rtol=1e-4), "mismatch (padded path)"

    # --- Case 7: multi-step grid (small block budget forces 4 grid steps) ---
    B7, N7, F7 = 32, 8, 32
    x7 = jax.random.normal(kx2, (B7, N7, F7), dtype=jnp.float32)
    len7 = 1 + (jax.random.uniform(kl, (B7,)) * N7).astype(jnp.int32).clip(0, N7 - 1)
    w7 = 1.0 + 0.1 * jax.random.normal(kw, (F7,), dtype=jnp.float32)
    b7 = 0.1 * jax.random.normal(kb, (F7,), dtype=jnp.float32)
    out7 = set_norm(x7, w7, b7, lengths=len7, target_block_bytes=4096)
    jax.block_until_ready(out7)
    ref7 = _reference(x7, w7, b7, lengths=len7)
    assert jnp.allclose(out7, ref7, atol=1e-4, rtol=1e-4), "mismatch (multi-step grid)"

    print("KERNEL_OK")
</pallas_src>

<mosaic_0001>
module attributes {stable_mosaic.version = 11 : i64} {
  func.func @_set_norm_kernel(%arg0: i32, %arg1: memref<2x1xi32, #tpu.memory_space<vmem>>, %arg2: memref<2x256xf32, #tpu.memory_space<vmem>>, %arg3: memref<1x256xf32, #tpu.memory_space<vmem>>, %arg4: memref<1x256xf32, #tpu.memory_space<vmem>>, %arg5: memref<2x256xf32, #tpu.memory_space<vmem>>) attributes {dimension_semantics = [#tpu.dimension_semantics<parallel>], iteration_bounds = array<i64: 1>, scalar_prefetch = 0 : i64, scratch_operands = 0 : i64, tpu.core_type = #tpu.core_type<tc>, window_params = [{transform_indices = @transform_0, window_bounds = array<i64: 2, 1>}, {transform_indices = @transform_1, window_bounds = array<i64: 2, 256>}, {pipeline_mode = #tpu.pipeline_mode<synchronous>, transform_indices = @transform_2, window_bounds = array<i64: 1, 256>}, {pipeline_mode = #tpu.pipeline_mode<synchronous>, transform_indices = @transform_3, window_bounds = array<i64: 1, 256>}, {transform_indices = @transform_4, window_bounds = array<i64: 2, 256>}]} {
    %c0 = arith.constant 0 : index
    %c0_0 = arith.constant 0 : index
    %0 = vector.load %arg2[%c0, %c0_0] : memref<2x256xf32, #tpu.memory_space<vmem>>, vector<2x256xf32>
    %cst = arith.constant dense<0.000000e+00> : vector<2xf32>
    %1 = vector.multi_reduction <add>, %0, %cst [1] : vector<2x256xf32> to vector<2xf32>
    %2 = vector.shape_cast %1 : vector<2xf32> to vector<2x1xf32>
    %cst_1 = arith.constant 2.560000e+02 : f32
    %3 = vector.broadcast %cst_1 : f32 to vector<2x1xf32>
    %4 = arith.divf %2, %3 : vector<2x1xf32>
    %5 = vector.broadcast %4 : vector<2x1xf32> to vector<2x256xf32>
    %6 = arith.subf %0, %5 : vector<2x256xf32>
    %7 = arith.mulf %6, %6 : vector<2x256xf32>
    %cst_2 = arith.constant dense<0.000000e+00> : vector<2xf32>
    %8 = vector.multi_reduction <add>, %7, %cst_2 [1] : vector<2x256xf32> to vector<2xf32>
    %9 = vector.shape_cast %8 : vector<2xf32> to vector<2x1xf32>
    %cst_3 = arith.constant 2.560000e+02 : f32
    %10 = vector.broadcast %cst_3 : f32 to vector<2x1xf32>
    %11 = arith.divf %9, %10 : vector<2x1xf32>
    %12 = math.sqrt %11 : vector<2x1xf32>
    %cst_4 = arith.constant 9.99999974E-6 : f32
    %13 = vector.broadcast %cst_4 : f32 to vector<2x1xf32>
    %14 = arith.addf %12, %13 : vector<2x1xf32>
    %cst_5 = arith.constant 1.000000e+00 : f32
    %15 = vector.broadcast %cst_5 : f32 to vector<2x1xf32>
    %16 = arith.divf %15, %14 : vector<2x1xf32>
    %c0_6 = arith.constant 0 : index
    %c0_7 = arith.constant 0 : index
    %17 = vector.load %arg3[%c0_6, %c0_7] : memref<1x256xf32, #tpu.memory_space<vmem>>, vector<1x256xf32>
    %c0_8 = arith.constant 0 : index
    %c0_9 = arith.constant 0 : index
    %18 = vector.load %arg4[%c0_8, %c0_9] : memref<1x256xf32, #tpu.memory_space<vmem>>, vector<1x256xf32>
    %19 = vector.broadcast %16 : vector<2x1xf32> to vector<2x256xf32>
    %20 = vector.broadcast %17 : vector<1x256xf32> to vector<2x256xf32>
    %21 = arith.mulf %19, %20 : vector<2x256xf32>
    %22 = arith.mulf %6, %21 : vector<2x256xf32>
    %23 = vector.broadcast %18 : vector<1x256xf32> to vector<2x256xf32>
    %24 = arith.addf %22, %23 : vector<2x256xf32>
    %c0_10 = arith.constant 0 : index
    %c0_11 = arith.constant 0 : index
    %25 = vector.load %arg5[%c0_10, %c0_11] : memref<2x256xf32, #tpu.memory_space<vmem>>, vector<2x256xf32>
    tpu.vector_store %arg5[%c0_10, %c0_11], %24 {strides = array<i32>} : memref<2x256xf32, #tpu.memory_space<vmem>>, vector<2x256xf32>,
    return
  }
  func.func @transform_0(%arg0: i32) -> (i32, i32) {
    %c0_i32 = arith.constant 0 : i32
    %c0_i32_0 = arith.constant 0 : i32
    return %arg0, %c0_i32 : i32, i32
  }
  func.func @transform_1(%arg0: i32) -> (i32, i32) {
    %c0_i32 = arith.constant 0 : i32
    %c0_i32_0 = arith.constant 0 : i32
    return %arg0, %c0_i32 : i32, i32
  }
  func.func @transform_2(%arg0: i32) -> (i32, i32) {
    %c0_i32 = arith.constant 0 : i32
    %c0_i32_0 = arith.constant 0 : i32
    %c0_i32_1 = arith.constant 0 : i32
    return %c0_i32, %c0_i32_0 : i32, i32
  }
  func.func @transform_3(%arg0: i32) -> (i32, i32) {
    %c0_i32 = arith.constant 0 : i32
    %c0_i32_0 = arith.constant 0 : i32
    %c0_i32_1 = arith.constant 0 : i32
    return %c0_i32, %c0_i32_0 : i32, i32
  }
  func.func @transform_4(%arg0: i32) -> (i32, i32) {
    %c0_i32 = arith.constant 0 : i32
    %c0_i32_0 = arith.constant 0 : i32
    return %arg0, %c0_i32 : i32, i32
  }
}

</mosaic_0001>

<llo_original>
// kernel: tpu_custom_call.1
$region0: #{tpu_custom_call.1}
  #allocation0 [shape = 'u32[]', space=smem, size = 0x4, offset = 0x4, fixed_abs, tag = 'smem constant byte address 0x4 - core index']
  #allocation1 [shape = 'u32[144,128]{1,0:T(1,128)}', space=vmem, size = 0x12000, scoped, tag = 'internal scratch']
  %s0 = inlined_call_operand.vmem [shape: s32[2,1], index: 0, kind: input, shape index: {}]
  %s1 = inlined_call_operand.vmem [shape: f32[2,256], index: 1, kind: input, shape index: {}]
  %s2 = inlined_call_operand.vmem [shape: f32[1,256], index: 2, kind: input, shape index: {}]
  %s3 = inlined_call_operand.vmem [shape: f32[1,256], index: 3, kind: input, shape index: {}]
  %s4 = inlined_call_operand.hbm [shape: f32[2,256], index: 4, kind: output, shape index: {}]
  %s5 = sld [smem:[#allocation0]]
  $region26: #{tpu_custom_call.1} parent=0
    _
  %s7 = ssub.s32 1, %s5
  %s8 = scalar_select 0, %s7, %s5
  $region1: #{tpu_custom_call.1} parent=0
    #allocation2 [shape = 'u8[2048]{0}', space=vmem, size = 0x800, scoped, tag = 'output window, operand 0, single buffered']
    #allocation3 [shape = 's32[1]{0}', space=sflag, size = 0x4, scoped, tag = 'scoped memory for tpu_custom_call.1']
    %9 = vsyncpa [#allocation3], 0
    // Predicated region
    $region2: #{tpu_custom_call.1} parent=1 // pred_check
      _
    $region3: #{tpu_custom_call.1} parent=1 // pred_check_branch
      %11 = sbr.rel (0) target = $region5
    $region4: #{tpu_custom_call.1} parent=1 // pred_region
      _
    $region5: #{tpu_custom_call.1} parent=1 // pred_fallthru
      _
    // Predicated region
    $region6: #{tpu_custom_call.1} parent=1 // pred_check
      _
    $region7: #{tpu_custom_call.1} parent=1 // pred_check_branch
      %13 = sbr.rel (0) target = $region9
    $region8: #{tpu_custom_call.1} parent=1 // pred_region
      _
    $region9: #{tpu_custom_call.1} parent=1 // pred_fallthru
      _
    // Predicated region
    $region10: #{tpu_custom_call.1} parent=1 // pred_check
      _
    $region11: #{tpu_custom_call.1} parent=1 // pred_check_branch
      %15 = sbr.rel (0) target = $region13
    $region12: #{tpu_custom_call.1} parent=1 // pred_region
      _
    $region13: #{tpu_custom_call.1} parent=1 // pred_fallthru
      _
    // Predicated region
    $region14: #{tpu_custom_call.1} parent=1 // pred_check
      _
    $region15: #{tpu_custom_call.1} parent=1 // pred_check_branch
      %17 = sbr.rel (0) target = $region17
    $region16: #{tpu_custom_call.1} parent=1 // pred_region
      _
    $region17: #{tpu_custom_call.1} parent=1 // pred_fallthru
      _
    %v18 = vld [vmem:[%s1] sm:$0xf]
    %v21 = vunpack.c.l.s4 1983009808
    %v22 = vunpack.c.0.s8 %v21
    %v23 = vlaneseq
    %v24 = vshrl.u32 %v23, 7
    %v25 = vsub.s32 %v22, %v24
    %v26 = vrot.slane %v18, %v25
    %v27 = vcombine.high %v26, %v26
    %vm30 = vcmask 1041408
    %v31 = vsel %vm30, %v26, 0.0
    %v32 = vsel %vm30, %v27, 0.0
    %v33 = vadd.f32 %v31, %v32
    %34 = vadd.xlane.f32.xlu0 %v33
    %v35 = vpop.xlane.xlu0 %34
    %v36 = vrcp.pop 256.0
    %v37 = vmul.f32 %v35, %v36
    %v40 = vunpack.c.l.s4 269488144
    %v41 = vunpack.c.0.s8 %v40
    %v42 = vlaneseq
    %v43 = vshrl.u32 %v42, 7
    %v44 = vsub.s32 %v41, %v43
    %v45 = vrot.slane %v37, %v44
    %v47 = vsub.f32 %v18, %v45
    %v48 = vmul.f32 %v47, %v47
    %v51 = vunpack.c.l.s4 1983009808
    %v52 = vunpack.c.0.s8 %v51
    %v53 = vlaneseq
    %v54 = vshrl.u32 %v53, 7
    %v55 = vsub.s32 %v52, %v54
    %v56 = vrot.slane %v48, %v55
    %v57 = vcombine.high %v56, %v56
    %v60 = vsel %vm30, %v56, 0.0
    %v61 = vsel %vm30, %v57, 0.0
    %v62 = vadd.f32 %v60, %v61
    %63 = vadd.xlane.f32.xlu0 %v62
    %v64 = vpop.xlane.xlu0 %63
    %v65 = vmul.f32 %v64, %v36
    %v66 = vrsqrt.pop %v65
    %v67 = vmul.f32 %v65, %v66
    %vm68 = vcmp.eq.f32.partialorder %v65, inf
    %v69 = vsel %vm68, %v65, %v67
    %vm70 = vcmp.eq.f32.partialorder %v65, 0.0
    %v71 = vand.u32 %v65, 2147483648
    %v72 = vsel %vm70, %v71, %v69
    %v73 = vadd.f32 %v72, 1e-05
    %v74 = vrcp.pop %v73
    %v75 = vmul.f32 1.0, %v74
    %v76 = vld [vmem:[%s2] sm:$0x3]
    %v77 = vld [vmem:[%s3] sm:$0x3]
    %v79 = vlaneseq
    %v80 = vshrl.u32 %v79, 7
    %v81 = vsub.s32 0, %v80
    %v82 = vrot.slane %v76, %v81
    %v83 = vlaneseq
    %v84 = vshrl.u32 %v83, 7
    %v85 = vsub.s32 1, %v84
    %v86 = vrot.slane %v76, %v85
    %v89 = vmul.f32 %v75, %v82
    %v90 = vmul.f32 %v75, %v86
    %v93 = vcombine.low %v89, %v90
    %v95 = vunpack.c.l.s4 1983009808
    %v96 = vunpack.c.0.s8 %v95
    %v97 = vlaneseq
    %v98 = vshrl.u32 %v97, 7
    %v99 = vsub.s32 %v96, %v98
    %v100 = vrot.slane %v93, %v99
    %v102 = vmul.f32 %v47, %v100
    %v104 = vlaneseq
    %v105 = vshrl.u32 %v104, 7
    %v106 = vsub.s32 0, %v105
    %v107 = vrot.slane %v77, %v106
    %v108 = vlaneseq
    %v109 = vshrl.u32 %v108, 7
    %v110 = vsub.s32 1, %v109
    %v111 = vrot.slane %v77, %v110
    %v112 = vcombine.low %v107, %v111
    %v114 = vunpack.c.l.s4 1983009808
    %v115 = vunpack.c.0.s8 %v114
    %v116 = vlaneseq
    %v117 = vshrl.u32 %v116, 7
    %v118 = vsub.s32 %v115, %v117
    %v119 = vrot.slane %v112, %v118
    %v121 = vadd.f32 %v102, %v119
    %122 = vst [vmem:[#allocation2] sm:$0xf] %v121
    // Predicated region
    $region18: #{tpu_custom_call.1} parent=1 // pred_check
      _
    $region19: #{tpu_custom_call.1} parent=1 // pred_check_branch
      %124 = sbr.rel (0) target = $region21
    $region20: #{tpu_custom_call.1} parent=1 // pred_region
      %s126 = ssub.s32 64, 64
      %127 = vsyncadd [#allocation3], %s126
      %s129 = sshll.u32 [#allocation2], 4
      %s130 = int_to_ptr.vmem [resolvable:$true] %s129
      %132 = dma.vmem_to_hbm [thread:$0]  %s130, 64, %s4, [#allocation3]
    $region21: #{tpu_custom_call.1} parent=1 // pred_fallthru
      _
    // Predicated region
    $region22: #{tpu_custom_call.1} parent=1 // pred_check
      _
    $region23: #{tpu_custom_call.1} parent=1 // pred_check_branch
      %134 = sbr.rel (0) target = $region25
    $region24: #{tpu_custom_call.1} parent=1 // pred_region
      %135 = dma.done [#allocation3], 64
    $region25: #{tpu_custom_call.1} parent=1 // pred_fallthru
      _
    %136 = vsyncpa [#allocation3], 1

</llo_original>
